<compile_context>
chip_gen: v7x
topology: tpu7x:2x2x1
jax: 0.10.0
libtpu: 0.0.40
codegen_flags: <defaults>
</compile_context>

<pallas_src>
import math

import jax
import jax.numpy as jnp
from jax.experimental import pallas as pl
from jax.experimental.pallas import tpu as pltpu

_MIB = 1024 * 1024

# ---------------------------------------------------------------------------
# Hardware queries / capability probes (cached, best-effort, isolated).
# ---------------------------------------------------------------------------
_HW_CACHE = {}


def _vmem_capacity_bytes():
    if "vmem" not in _HW_CACHE:
        cap = None
        try:
            cap = getattr(pltpu.get_tpu_info(), "vmem_capacity_bytes", None)
        except Exception:  # noqa: BLE001 - best-effort hardware query only
            cap = None
        # Unknown -> assume the smallest current generation (v7x: 64 MiB / TC).
        _HW_CACHE["vmem"] = int(cap) if cap else 64 * _MIB
    return _HW_CACHE["vmem"]


def _vmem_budget_cap():
    phys = _vmem_capacity_bytes()
    # v7x (64 MiB physical): leave ~14 MiB for compiler scratch / semaphores.
    # v5e / v6e (128 MiB physical): allow up to 100 MiB for big maps.
    return 50 * _MIB if phys <= 64 * _MIB else 100 * _MIB


def _prefer_256_row_tiles():
    # v6e/v7x MXUs are 2x256^2 -> 256-row LHS tiles fill the MXU output dim;
    # v5e is 4x128^2, so 128-row tiles are already full width there.
    if "mxu256" not in _HW_CACHE:
        pref = True
        try:
            ver = getattr(pltpu.get_tpu_info(), "chip_version", None)
            if ver is not None and "5" in str(ver).lower():
                pref = False
        except Exception:  # noqa: BLE001 - best-effort hardware query only
            pass
        _HW_CACHE["mxu256"] = pref
    return _HW_CACHE["mxu256"]


def _probe_kernel(x_ref, o_ref):
    o_ref[...] = x_ref[...] + 1.0


def _single_buffer_supported():
    """One-time probe: does this Pallas build accept pl.Buffered(1)?"""
    if "buf1" not in _HW_CACHE:
        try:
            f = pl.pallas_call(
                _probe_kernel,
                out_shape=jax.ShapeDtypeStruct((16, 128), jnp.float32),
                grid=(2,),
                in_specs=[
                    pl.BlockSpec((8, 128), lambda i: (0, 0),
                                 pipeline_mode=pl.Buffered(1)),
                ],
                out_specs=pl.BlockSpec((8, 128), lambda i: (i, 0)),
            )
            jax.block_until_ready(f(jnp.zeros((8, 128), jnp.float32)))
            _HW_CACHE["buf1"] = True
        except Exception:  # noqa: BLE001 - isolated capability probe only
            _HW_CACHE["buf1"] = False
    return _HW_CACHE["buf1"]


# ---------------------------------------------------------------------------
# Basis construction (cached — the module has no learned parameters;
# expkM/expkN are derived constants, rebuilt here as real sin/cos bases).
# ---------------------------------------------------------------------------
_BASIS_CACHE = {}


def _get_bases(M, N, n_pad, compute_dtype):
    key = (M, N, n_pad, jnp.dtype(compute_dtype).name)
    if key not in _BASIS_CACHE:
        # S[u, p] = sin(pi * p * (2u+1) / (2M)),  shape [M, M]
        u = jnp.arange(M, dtype=jnp.float32)[:, None]
        p = jnp.arange(M, dtype=jnp.float32)[None, :]
        S = jnp.sin(math.pi * p * (2.0 * u + 1.0) / (2.0 * M)).astype(compute_dtype)
        # Ct[q, v] = cos(pi * q * (2v+1) / (2N)), zero padded to [n_pad, n_pad]
        # so both matmuls are lane dense and the second matmul's K is >= 128.
        q = jnp.arange(N, dtype=jnp.float32)[:, None]
        v = jnp.arange(N, dtype=jnp.float32)[None, :]
        Ct = jnp.cos(math.pi * q * (2.0 * v + 1.0) / (2.0 * N))
        if n_pad > N:
            Ct = jnp.pad(Ct, ((0, n_pad - N), (0, n_pad - N)))
        _BASIS_CACHE[key] = (S, Ct.astype(compute_dtype))
    return _BASIS_CACHE[key]


def _pick_row_tile(M):
    # Small maps: one grid step, no per-step pipeline overhead.
    if M <= 128:
        return M
    cands = (256, 128, 64, 32, 16) if _prefer_256_row_tiles() else (128, 256, 64, 32, 16)
    # Prefer >= 4 grid steps (>= 2 per v7x TensorCore -> double-buffered DMA
    # overlap on each core); fall back to >= 2 steps, then a single full block.
    for min_steps in (4, 2):
        for cand in cands:
            if M % cand == 0 and M // cand >= min_steps:
                return cand
    return M


# ---------------------------------------------------------------------------
# Kernels
# ---------------------------------------------------------------------------
def _idxst_idct_kernel(s_ref, x_ref, ct_ref, o_ref):
    # t[u, q] = sum_p S[u, p] * x[p, q]            (IDXST along rows)
    t = jnp.dot(s_ref[...], x_ref[...], preferred_element_type=jnp.float32)
    t = t.astype(ct_ref.dtype)                     # keep MXU on the bf16 path
    # o[u, v] = sum_q t[u, q] * Ct[q, v]           (IDCT along columns)
    o = jnp.dot(t, ct_ref[...], preferred_element_type=jnp.float32)
    o_ref[...] = o.astype(o_ref.dtype)


def _idxst_idct_col_kernel(s_ref, x_ref, ct_ref, o_ref, t_ref):
    # Column-tiled variant for maps whose resident constants exceed the VMEM
    # budget. t = S_tile @ x is computed once per row tile (j == 0) and reused
    # across all column tiles of that row tile.
    @pl.when(pl.program_id(1) == 0)
    def _():
        t_ref[...] = jnp.dot(
            s_ref[...], x_ref[...], preferred_element_type=jnp.float32
        ).astype(t_ref.dtype)

    o = jnp.dot(t_ref[...], ct_ref[...], preferred_element_type=jnp.float32)
    o_ref[...] = o.astype(o_ref.dtype)


# ---------------------------------------------------------------------------
# Wrapper
# ---------------------------------------------------------------------------
def idxst_idct(x, *, compute_dtype=jnp.bfloat16, tm=None, tn=None,
               force_column_tile=False):
    """Pallas TPU implementation of IdxstIdct.forward(x) for a 2-D x of shape [M, N]."""
    assert x.ndim == 2
    M, N = x.shape
    out_dtype = x.dtype

    # Lane-dense columns: pad the lane dimension up to a multiple of 128.
    n_pad = ((N + 127) // 128) * 128

    if tm is None:
        tm = _pick_row_tile(M)
    assert M % tm == 0, "row tile must divide M"

    S, Ct = _get_bases(M, N, n_pad, compute_dtype)
    xc = x.astype(compute_dtype)
    if n_pad > N:
        xc = jnp.pad(xc, ((0, 0), (0, n_pad - N)))

    bytes_c = jnp.dtype(compute_dtype).itemsize
    bytes_o = jnp.dtype(out_dtype).itemsize

    cap = _vmem_budget_cap()
    headroom = 4 * _MIB                      # Mosaic internal scratch, sems, etc.
    single_buf = _single_buffer_supported()
    const_bufs = 1 if single_buf else 2
    const_kwargs = {"pipeline_mode": pl.Buffered(1)} if single_buf else {}

    # Advisory cost estimate for XLA's scheduler.
    cost = pl.CostEstimate(
        flops=int(2 * M * M * n_pad + 2 * M * n_pad * n_pad),
        transcendentals=0,
        bytes_accessed=int(
            (M * M + M * n_pad + n_pad * n_pad) * bytes_c + M * n_pad * bytes_o
        ),
    )

    # Resident VMEM for the single-shot (row-tiled) kernel.
    row_need = (
        2 * tm * M * bytes_c                     # S row tile, double buffered
        + const_bufs * M * n_pad * bytes_c       # x, fully resident
        + const_bufs * n_pad * n_pad * bytes_c   # Ct, fully resident
        + 2 * tm * n_pad * bytes_o               # out tile, double buffered
        + 2 * tm * n_pad * 4                     # f32 t + f32 pre-store output
    ) + headroom

    use_column = force_column_tile or (tn is not None) or row_need > cap

    if not use_column:
        vmem_limit = int(min(cap, max(32 * _MIB, 2 * row_need)))
        out = pl.pallas_call(
            _idxst_idct_kernel,
            out_shape=jax.ShapeDtypeStruct((M, n_pad), out_dtype),
            grid=(M // tm,),
            in_specs=[
                pl.BlockSpec((tm, M), lambda i: (i, 0)),                         # S row tile
                pl.BlockSpec((M, n_pad), lambda i: (0, 0), **const_kwargs),      # full x
                pl.BlockSpec((n_pad, n_pad), lambda i: (0, 0), **const_kwargs),  # full Ct
            ],
            out_specs=pl.BlockSpec((tm, n_pad), lambda i: (i, 0)),
            compiler_params=pltpu.CompilerParams(
                dimension_semantics=("parallel",),
                vmem_limit_bytes=vmem_limit,
            ),
            cost_estimate=cost,
        )(S, xc, Ct)
    else:
        # Column-tiled path (large maps / tight v7x VMEM): Ct and out are tiled
        # along the lane axis; the first matmul is amortized across column tiles.
        def col_need(tn_):
            return (
                2 * tm * M * bytes_c                 # S row tile, double buffered
                + const_bufs * M * n_pad * bytes_c   # x, fully resident
                + 2 * n_pad * tn_ * bytes_c          # Ct column tile, double buffered
                + 2 * tm * tn_ * bytes_o             # out tile, double buffered
                + tm * n_pad * bytes_c               # t scratch
                + tm * n_pad * 4 + tm * tn_ * 4      # f32 matmul results
            ) + headroom

        if tn is None:
            tn = 128
            for cand in (1024, 512, 256, 128):
                if n_pad % cand == 0 and n_pad // cand >= 2 and col_need(cand) <= cap:
                    tn = cand
                    break
        assert n_pad % tn == 0, "column tile must divide padded N"
        # TODO(synk): if x alone (M * n_pad * bytes_c) exceeds the VMEM budget
        # (e.g. 8k x 8k maps on v7x), a K-tiled variant of the first matmul is
        # needed; not implemented here.
        vmem_limit = int(min(cap, max(32 * _MIB, 2 * col_need(tn))))
        out = pl.pallas_call(
            _idxst_idct_col_kernel,
            out_shape=jax.ShapeDtypeStruct((M, n_pad), out_dtype),
            grid=(M // tm, n_pad // tn),
            in_specs=[
                pl.BlockSpec((tm, M), lambda i, j: (i, 0)),                     # S row tile
                pl.BlockSpec((M, n_pad), lambda i, j: (0, 0), **const_kwargs),  # full x
                pl.BlockSpec((n_pad, tn), lambda i, j: (0, j)),                 # Ct col tile
            ],
            out_specs=pl.BlockSpec((tm, tn), lambda i, j: (i, j)),
            scratch_shapes=[pltpu.VMEM((tm, n_pad), compute_dtype)],
            compiler_params=pltpu.CompilerParams(
                dimension_semantics=("parallel", "arbitrary"),
                vmem_limit_bytes=vmem_limit,
            ),
            cost_estimate=cost,
        )(S, xc, Ct)

    return out[:, :N] if n_pad != N else out


# ---------------------------------------------------------------------------
# Pure-JAX reference (exact f32, HIGHEST matmul precision)
# ---------------------------------------------------------------------------
def _reference_idxst_idct(x):
    M, N = x.shape
    u = jnp.arange(M, dtype=jnp.float32)[:, None]
    p = jnp.arange(M, dtype=jnp.float32)[None, :]
    S = jnp.sin(math.pi * p * (2.0 * u + 1.0) / (2.0 * M))
    q = jnp.arange(N, dtype=jnp.float32)[:, None]
    v = jnp.arange(N, dtype=jnp.float32)[None, :]
    Ct = jnp.cos(math.pi * q * (2.0 * v + 1.0) / (2.0 * N))
    t = jnp.dot(S, x.astype(jnp.float32), precision=jax.lax.Precision.HIGHEST)
    return jnp.dot(t, Ct, precision=jax.lax.Precision.HIGHEST)


if __name__ == "__main__":
    key = jax.random.PRNGKey(0)
    key0, key1 = jax.random.split(key)

    # Small placement map, like the module's single (M, N) density grid.
    M, N = 64, 32
    x = jax.random.normal(key0, (M, N), dtype=jnp.float32)

    ref = _reference_idxst_idct(x)
    scale = float(jnp.max(jnp.abs(ref)))

    # Default production path: bf16 operands, f32 MXU accumulation (row-tiled).
    out = jax.block_until_ready(idxst_idct(x))
    assert out.shape == (M, N) and out.dtype == x.dtype
    rel_err_bf16 = float(jnp.max(jnp.abs(out.astype(jnp.float32) - ref))) / scale
    assert rel_err_bf16 < 3e-2, f"bf16 row path mismatch vs reference (rel err {rel_err_bf16})"

    # Full-f32 path for a tighter numerical check of the same kernel structure.
    out_f32 = jax.block_until_ready(idxst_idct(x, compute_dtype=jnp.float32))
    rel_err_f32 = float(jnp.max(jnp.abs(out_f32 - ref))) / scale
    assert rel_err_f32 < 2e-2, f"f32 row path mismatch vs reference (rel err {rel_err_f32})"

    # Exercise the column-tiled (large-map / v7x-VMEM) code path at a small size.
    M2, N2 = 128, 256
    x2 = jax.random.normal(key1, (M2, N2), dtype=jnp.float32)
    ref2 = _reference_idxst_idct(x2)
    scale2 = float(jnp.max(jnp.abs(ref2)))
    out2 = jax.block_until_ready(idxst_idct(x2, force_column_tile=True, tn=128))
    assert out2.shape == (M2, N2) and out2.dtype == x2.dtype
    rel_err_col = float(jnp.max(jnp.abs(out2.astype(jnp.float32) - ref2))) / scale2
    assert rel_err_col < 3e-2, f"bf16 column path mismatch vs reference (rel err {rel_err_col})"

    print("KERNEL_OK")
</pallas_src>

<mosaic_0001>
module attributes {stable_mosaic.version = 11 : i64} {
  func.func @_probe_kernel(%arg0: i32, %arg1: memref<8x128xf32, #tpu.memory_space<vmem>>, %arg2: memref<8x128xf32, #tpu.memory_space<vmem>>) attributes {dimension_semantics = [#tpu.dimension_semantics<arbitrary>], iteration_bounds = array<i64: 2>, scalar_prefetch = 0 : i64, scratch_operands = 0 : i64, tpu.core_type = #tpu.core_type<tc>, window_params = [{pipeline_mode = #tpu.pipeline_mode<synchronous>, transform_indices = @transform_0, window_bounds = array<i64: 8, 128>}, {transform_indices = @transform_1, window_bounds = array<i64: 8, 128>}]} {
    %c0 = arith.constant 0 : index
    %c0_0 = arith.constant 0 : index
    %0 = vector.load %arg1[%c0, %c0_0] : memref<8x128xf32, #tpu.memory_space<vmem>>, vector<8x128xf32>
    %cst = arith.constant 1.000000e+00 : f32
    %1 = vector.broadcast %cst : f32 to vector<8x128xf32>
    %2 = arith.addf %0, %1 : vector<8x128xf32>
    %c0_1 = arith.constant 0 : index
    %c0_2 = arith.constant 0 : index
    %3 = vector.load %arg2[%c0_1, %c0_2] : memref<8x128xf32, #tpu.memory_space<vmem>>, vector<8x128xf32>
    tpu.vector_store %arg2[%c0_1, %c0_2], %2 {strides = array<i32>} : memref<8x128xf32, #tpu.memory_space<vmem>>, vector<8x128xf32>,
    return
  }
  func.func @transform_0(%arg0: i32) -> (i32, i32) {
    %c0_i32 = arith.constant 0 : i32
    %c0_i32_0 = arith.constant 0 : i32
    %c0_i32_1 = arith.constant 0 : i32
    return %c0_i32, %c0_i32_0 : i32, i32
  }
  func.func @transform_1(%arg0: i32) -> (i32, i32) {
    %c0_i32 = arith.constant 0 : i32
    %c0_i32_0 = arith.constant 0 : i32
    return %arg0, %c0_i32 : i32, i32
  }
}

module attributes {stable_mosaic.version = 11 : i64} {
  func.func @_idxst_idct_kernel(%arg0: i32, %arg1: memref<64x64xbf16, #tpu.memory_space<vmem>>, %arg2: memref<64x128xbf16, #tpu.memory_space<vmem>>, %arg3: memref<128x128xbf16, #tpu.memory_space<vmem>>, %arg4: memref<64x128xf32, #tpu.memory_space<vmem>>) attributes {dimension_semantics = [#tpu.dimension_semantics<parallel>], iteration_bounds = array<i64: 1>, scalar_prefetch = 0 : i64, scratch_operands = 0 : i64, tpu.core_type = #tpu.core_type<tc>, window_params = [{transform_indices = @transform_0, window_bounds = array<i64: 64, 64>}, {pipeline_mode = #tpu.pipeline_mode<synchronous>, transform_indices = @transform_1, window_bounds = array<i64: 64, 128>}, {pipeline_mode = #tpu.pipeline_mode<synchronous>, transform_indices = @transform_2, window_bounds = array<i64: 128, 128>}, {transform_indices = @transform_3, window_bounds = array<i64: 64, 128>}]} {
    %c0 = arith.constant 0 : index
    %c0_0 = arith.constant 0 : index
    %0 = vector.load %arg1[%c0, %c0_0] : memref<64x64xbf16, #tpu.memory_space<vmem>>, vector<64x64xbf16>
    %c0_1 = arith.constant 0 : index
    %c0_2 = arith.constant 0 : index
    %1 = vector.load %arg2[%c0_1, %c0_2] : memref<64x128xbf16, #tpu.memory_space<vmem>>, vector<64x128xbf16>
    %cst = arith.constant dense<0.000000e+00> : vector<64x128xf32>
    %2 = tpu.matmul %0, %1, %cst {dimension_numbers = #tpu.dot_dimension_numbers<[1], [0], [0], [1], [0, 0, 1, 1], [], []>} : vector<64x64xbf16>, vector<64x128xbf16>, vector<64x128xf32> -> vector<64x128xf32>
    %3 = arith.truncf %2 : vector<64x128xf32> to vector<64x128xbf16>
    %c0_3 = arith.constant 0 : index
    %c0_4 = arith.constant 0 : index
    %4 = vector.load %arg3[%c0_3, %c0_4] : memref<128x128xbf16, #tpu.memory_space<vmem>>, vector<128x128xbf16>
    %cst_5 = arith.constant dense<0.000000e+00> : vector<64x128xf32>
    %5 = tpu.matmul %3, %4, %cst_5 {dimension_numbers = #tpu.dot_dimension_numbers<[1], [0], [0], [1], [0, 0, 1, 1], [], []>} : vector<64x128xbf16>, vector<128x128xbf16>, vector<64x128xf32> -> vector<64x128xf32>
    %c0_6 = arith.constant 0 : index
    %c0_7 = arith.constant 0 : index
    %6 = vector.load %arg4[%c0_6, %c0_7] : memref<64x128xf32, #tpu.memory_space<vmem>>, vector<64x128xf32>
    tpu.vector_store %arg4[%c0_6, %c0_7], %5 {strides = array<i32>} : memref<64x128xf32, #tpu.memory_space<vmem>>, vector<64x128xf32>,
    return
  }
  func.func @transform_0(%arg0: i32) -> (i32, i32) {
    %c0_i32 = arith.constant 0 : i32
    %c0_i32_0 = arith.constant 0 : i32
    return %arg0, %c0_i32 : i32, i32
  }
  func.func @transform_1(%arg0: i32) -> (i32, i32) {
    %c0_i32 = arith.constant 0 : i32
    %c0_i32_0 = arith.constant 0 : i32
    %c0_i32_1 = arith.constant 0 : i32
    return %c0_i32, %c0_i32_0 : i32, i32
  }
  func.func @transform_2(%arg0: i32) -> (i32, i32) {
    %c0_i32 = arith.constant 0 : i32
    %c0_i32_0 = arith.constant 0 : i32
    %c0_i32_1 = arith.constant 0 : i32
    return %c0_i32, %c0_i32_0 : i32, i32
  }
  func.func @transform_3(%arg0: i32) -> (i32, i32) {
    %c0_i32 = arith.constant 0 : i32
    %c0_i32_0 = arith.constant 0 : i32
    return %arg0, %c0_i32 : i32, i32
  }
}

</mosaic_0001>

<llo_original>
// kernel: tpu_custom_call.1
$region0: #{tpu_custom_call.1}
  #allocation0 [shape = 'u32[]', space=smem, size = 0x4, offset = 0x4, fixed_abs, tag = 'smem constant byte address 0x4 - core index']
  #allocation1 [shape = 'u32[144,128]{1,0:T(1,128)}', space=vmem, size = 0x12000, scoped, tag = 'internal scratch']
  %s0 = inlined_call_operand.hbm [shape: f32[8,128], index: 0, kind: input, shape index: {}]
  %s1 = inlined_call_operand.hbm [shape: f32[16,128], index: 1, kind: output, shape index: {}]
  %s2 = sld [smem:[#allocation0]]
  $region41: #{tpu_custom_call.1} parent=0
    _
  %s4 = ssub.s32 1, %s2
  %s5 = scalar_select 0, %s4, %s2
  $region1: #{tpu_custom_call.1} parent=0
    #allocation2 [shape = 'u8[4096]{0}', space=vmem, size = 0x1000, scoped, tag = 'input window, operand 0, single buffered']
    #allocation3 [shape = 's32[2]{0}', space=sflag, size = 0x8, scoped, tag = 'scoped memory for tpu_custom_call.1']
    #allocation4 [shape = 's32[2]{0}', space=sflag, size = 0x8, scoped, tag = 'scoped memory for tpu_custom_call.1']
    #allocation5 [shape = 'u8[8192]{0}', space=vmem, size = 0x2000, scoped, tag = 'output window, operand 0']
    %6 = vsyncpa [#allocation3], 0
    %7 = vsyncpa [#allocation4], 0
    %s8 = scalar_lea.sflag [#allocation4], 1
    %9 = vsyncpa %s8, 0
    loop: start=0, step=1, limit=4
    $region2: #{tpu_custom_call.1} parent=1 // loop_pre_header
      _
    $region3: #{tpu_custom_call.1} parent=1 // loop_header
      %s11 = sphi 0, %s15
      %p12 = scmp.ge.s32.totalorder %s11, 4
      %s19 = sphi 0, %s19
      %s21 = sphi 0, %s19
      %s22 = sphi 0, %s21
      %s36 = sphi 0, %s22
      %s42 = sphi 0, %s44
      %s45 = sphi 0, %s42
      %s46 = sphi 0, %s45
      %s62 = sphi 0, %s46
    $region4: #{tpu_custom_call.1} parent=1 // loop_header_branch
      %14 = sbr.rel (%p12) target = $region8
    $region5: #{tpu_custom_call.1} parent=1 // loop_body
      %s16 = ssub.s32 %s11, 1
      %s17 = ssub.s32 %s11, 2
      %s18 = sadd.s32 %s11, 1
      %s20 = sadd.s32 %s19, 1
      %p23 = scmp.eq.s32.totalorder %s11, 1
      %p24 = scmp.ne.s32.totalorder %s19, %s21
      %p25 = scmp.eq.s32.totalorder %s11, 0
      %p26 = por %p24, %p25
      %p27 = scmp.ne.s32.totalorder %s19, %s21
      %p28 = scmp.eq.s32.totalorder %s16, 1
      %p29 = por %p27, %p28
      %p30 = scmp.ne.s32.totalorder %s21, %s22
      %p31 = scmp.eq.s32.totalorder %s16, 0
      %p32 = por %p30, %p31
      %p33 = scmp.ne.s32.totalorder %s21, %s22
      %p34 = scmp.eq.s32.totalorder %s17, 1
      %p35 = por %p33, %p34
      %p37 = scmp.ne.s32.totalorder %s22, %s36
      %p38 = scmp.eq.s32.totalorder %s17, 0
      %p39 = por %p37, %p38
      %s40 = ssub.s32 %s11, %s18
      %p41 = scmp.eq.s32.totalorder %s40, 0
      %s43 = sadd.s32 %s42, 1
      %s44 = scalar_select %p41, %s42, %s43
      %p47 = pneg %p41
      %p48 = scmp.eq.s32.totalorder %s11, 1
      %p49 = por %p47, %p48
      %p50 = scmp.ne.s32.totalorder %s42, %s45
      %p51 = scmp.eq.s32.totalorder %s11, 0
      %p52 = por %p50, %p51
      %p53 = scmp.ne.s32.totalorder %s42, %s45
      %p54 = scmp.eq.s32.totalorder %s16, 1
      %p55 = por %p53, %p54
      %p56 = scmp.ne.s32.totalorder %s45, %s46
      %p57 = scmp.eq.s32.totalorder %s16, 0
      %p58 = por %p56, %p57
      %p59 = scmp.ne.s32.totalorder %s45, %s46
      %p60 = scmp.eq.s32.totalorder %s17, 1
      %p61 = por %p59, %p60
      %p63 = scmp.ne.s32.totalorder %s46, %s62
      %p64 = scmp.eq.s32.totalorder %s17, 0
      %p65 = por %p63, %p64
      %p66 = scmp.le.s32.totalorder 1, %s11
      %p67 = scmp.lt.s32.totalorder %s11, 3
      %p68 = pnand %p66, %p67
      %p69 = pneg %p68
      // Predicated region
      $region9: #{tpu_custom_call.1} parent=5 // pred_check
        _
      $region10: #{tpu_custom_call.1} parent=5 // pred_check_branch
        %71 = sbr.rel (%p68) target = $region12
      $region11: #{tpu_custom_call.1} parent=5 // pred_region
        %s72 = ssub.s32 %s11, 1
        // Predicated region
        $region13: #{tpu_custom_call.1} parent=11 // pred_check
          %p73 = pneg %p32
        $region14: #{tpu_custom_call.1} parent=11 // pred_check_branch
          %75 = sbr.rel (%p73) target = $region16
        $region15: #{tpu_custom_call.1} parent=11 // pred_region
          %s77 = ssub.s32 128, 128
          %78 = vsyncadd [#allocation3], %s77
          %s80 = sshll.u32 [#allocation2], 4
          %s81 = int_to_ptr.vmem [resolvable:$true] %s80
          %83 = dma.hbm_to_vmem [thread:$0]  %s0, 128, %s81, [#allocation3]
        $region16: #{tpu_custom_call.1} parent=11 // pred_fallthru
          _
      $region12: #{tpu_custom_call.1} parent=5 // pred_fallthru
        _
      %p84 = scmp.lt.s32.totalorder %s11, 2
      // Predicated region
      $region17: #{tpu_custom_call.1} parent=5 // pred_check
        %p85 = pneg %p84
      $region18: #{tpu_custom_call.1} parent=5 // pred_check_branch
        %87 = sbr.rel (%p85) target = $region20
      $region19: #{tpu_custom_call.1} parent=5 // pred_region
        _
      $region20: #{tpu_custom_call.1} parent=5 // pred_fallthru
        _
      %p88 = scmp.le.s32.totalorder 1, %s11
      %p89 = scmp.lt.s32.totalorder %s11, 3
      %p90 = pnand %p88, %p89
      %p91 = pneg %p90
      // Predicated region
      $region21: #{tpu_custom_call.1} parent=5 // pred_check
        _
      $region22: #{tpu_custom_call.1} parent=5 // pred_check_branch
        %93 = sbr.rel (%p90) target = $region24
      $region23: #{tpu_custom_call.1} parent=5 // pred_region
        %s94 = ssub.s32 %s11, 1
        // Predicated region
        $region25: #{tpu_custom_call.1} parent=23 // pred_check
          %p95 = pneg %p32
        $region26: #{tpu_custom_call.1} parent=23 // pred_check_branch
          %97 = sbr.rel (%p95) target = $region28
        $region27: #{tpu_custom_call.1} parent=23 // pred_region
          %98 = dma.done [#allocation3], 128
        $region28: #{tpu_custom_call.1} parent=23 // pred_fallthru
          _
        %p99 = pneg %p32
        %p100 = pneg %p29
        %p101 = pneg %p58
        %p102 = pneg %p55
        %s103 = sand.u32 %s45, 1
        %s104 = scalar_lea.sflag [#allocation4], %s103
        %s105 = sand.u32 %s45, 1
        %s106 = smul.addr %s105, 8
        %s107 = scalar_lea.vmem [#allocation5], %s106
        %v108 = vld [vmem:[#allocation2] sm:$0xff]
        %v109 = vadd.f32 %v108, 1.0
        %110 = vst [vmem:[%s107] sm:$0xff] %v109
        %s111 = sand.u32 %s45, 1
        %s112 = scalar_lea.sflag [#allocation4], %s111
        %s113 = sand.u32 %s45, 1
        %s114 = smul.addr %s113, 8
        %s115 = scalar_lea.vmem [#allocation5], %s114
        // Predicated region
        $region29: #{tpu_custom_call.1} parent=23 // pred_check
          %p116 = pneg %p55
        $region30: #{tpu_custom_call.1} parent=23 // pred_check_branch
          %118 = sbr.rel (%p116) target = $region32
        $region31: #{tpu_custom_call.1} parent=23 // pred_region
          %s120 = ssub.s32 128, 128
          %121 = vsyncadd %s112, %s120
          %s122 = smul.addr %s16, 128
          %s123 = scalar_lea.hbm %s1, %s122
          %s125 = sshll.u32 %s115, 4
          %s126 = int_to_ptr.vmem [resolvable:$true] %s125
          %128 = dma.vmem_to_hbm [thread:$0]  %s126, 128, %s123, %s112
        $region32: #{tpu_custom_call.1} parent=23 // pred_fallthru
          _
      $region24: #{tpu_custom_call.1} parent=5 // pred_fallthru
        _
      %p129 = scmp.le.s32.totalorder 2, %s11
      // Predicated region
      $region33: #{tpu_custom_call.1} parent=5 // pred_check
        %p130 = pneg %p129
      $region34: #{tpu_custom_call.1} parent=5 // pred_check_branch
        %132 = sbr.rel (%p130) target = $region36
      $region35: #{tpu_custom_call.1} parent=5 // pred_region
        %s133 = ssub.s32 %s11, 2
        // Predicated region
        $region37: #{tpu_custom_call.1} parent=35 // pred_check
          %p134 = pneg %p61
        $region38: #{tpu_custom_call.1} parent=35 // pred_check_branch
          %136 = sbr.rel (%p134) target = $region40
        $region39: #{tpu_custom_call.1} parent=35 // pred_region
          %s137 = sand.u32 %s46, 1
          %s138 = scalar_lea.sflag [#allocation4], %s137
          %s139 = sand.u32 %s46, 1
          %s140 = smul.addr %s139, 8
          %s141 = scalar_lea.vmem [#allocation5], %s140
          %142 = dma.done %s138, 128
        $region40: #{tpu_custom_call.1} parent=35 // pred_fallthru
          _
      $region36: #{tpu_custom_call.1} parent=5 // pred_fallthru
        _
    $region6: #{tpu_custom_call.1} parent=1 // loop_footer
      %s15 = sadd.s32 1, %s11
    $region7: #{tpu_custom_call.1} parent=1 // loop_footer_branch
      %10 = sbr.rel target = $region3
    $region8: #{tpu_custom_call.1} parent=1 // loop_exit
      _
    %143 = vsyncpa [#allocation3], 1
    %s144 = scalar_lea.sflag [#allocation3], 1
    %145 = vsyncpa %s144, 1
    %146 = vsyncpa [#allocation4], 1
    %s147 = scalar_lea.sflag [#allocation4], 1
    %148 = vsyncpa %s147, 1

// kernel: tpu_custom_call.1
$region0: #{tpu_custom_call.1}
  #allocation0 [shape = 'u32[]', space=smem, size = 0x4, offset = 0x4, fixed_abs, tag = 'smem constant byte address 0x4 - core index']
  #allocation1 [shape = 'u32[144,128]{1,0:T(1,128)}', space=vmem, size = 0x12000, scoped, tag = 'internal scratch']
  %s0 = inlined_call_operand.hbm [shape: bf16[64,64], index: 0, kind: input, shape index: {}]
  %s1 = inlined_call_operand.hbm [shape: bf16[64,128], index: 1, kind: input, shape index: {}]
  %s2 = inlined_call_operand.hbm [shape: bf16[128,128], index: 2, kind: input, shape index: {}]
  %s3 = inlined_call_operand.hbm [shape: f32[64,128], index: 3, kind: output, shape index: {}]
  %s4 = sld [smem:[#allocation0]]
  $region34: #{tpu_custom_call.1} parent=0
    _
  %s6 = ssub.s32 1, %s4
  %s7 = scalar_select 0, %s6, %s4
  $region1: #{tpu_custom_call.1} parent=0
    #allocation2 [shape = 'u8[16384]{0}', space=vmem, size = 0x4000, scoped, tag = 'input window, operand 0, single buffered']
    #allocation3 [shape = 's32[1]{0}', space=sflag, size = 0x4, scoped, tag = 'scoped memory for tpu_custom_call.1']
    #allocation4 [shape = 's32[1]{0}', space=sflag, size = 0x4, scoped, tag = 'scoped memory for tpu_custom_call.1']
    #allocation5 [shape = 'u8[16384]{0}', space=vmem, size = 0x4000, scoped, tag = 'input window, operand 1, single buffered']
    #allocation6 [shape = 's32[1]{0}', space=sflag, size = 0x4, scoped, tag = 'scoped memory for tpu_custom_call.1']
    #allocation7 [shape = 'u8[32768]{0}', space=vmem, size = 0x8000, scoped, tag = 'input window, operand 2, single buffered']
    #allocation8 [shape = 'u8[32768]{0}', space=vmem, size = 0x8000, scoped, tag = 'output window, operand 0, single buffered']
    %8 = vsyncpa [#allocation3], 0
    %9 = vsyncpa [#allocation6], 0
    %10 = vsyncpa [#allocation4], 0
    // Predicated region
    $region2: #{tpu_custom_call.1} parent=1 // pred_check
      _
    $region3: #{tpu_custom_call.1} parent=1 // pred_check_branch
      %12 = sbr.rel (0) target = $region5
    $region4: #{tpu_custom_call.1} parent=1 // pred_region
      %s14 = ssub.s32 512, 512
      %15 = vsyncadd [#allocation3], %s14
      %s16 = sshll.u32 [#allocation2], 4
      %s17 = int_to_ptr.vmem [resolvable:$true] %s16
      %22 = dma.hbm_to_vmem [thread:$0]  %s0, 512, %s17, [#allocation3], 64, 64, 4
    $region5: #{tpu_custom_call.1} parent=1 // pred_fallthru
      _
    // Predicated region
    $region6: #{tpu_custom_call.1} parent=1 // pred_check
      _
    $region7: #{tpu_custom_call.1} parent=1 // pred_check_branch
      %24 = sbr.rel (0) target = $region9
    $region8: #{tpu_custom_call.1} parent=1 // pred_region
      %s26 = ssub.s32 512, 512
      %27 = vsyncadd [#allocation6], %s26
      %s28 = sshll.u32 [#allocation5], 4
      %s29 = int_to_ptr.vmem [resolvable:$true] %s28
      %34 = dma.hbm_to_vmem [thread:$0]  %s1, 512, %s29, [#allocation6], 64, 64, 4
    $region9: #{tpu_custom_call.1} parent=1 // pred_fallthru
      _
    // Predicated region
    $region10: #{tpu_custom_call.1} parent=1 // pred_check
      _
    $region11: #{tpu_custom_call.1} parent=1 // pred_check_branch
      %36 = sbr.rel (0) target = $region13
    $region12: #{tpu_custom_call.1} parent=1 // pred_region
      %s38 = ssub.s32 1024, 1024
      %39 = vsyncadd [#allocation6], %s38
      %s40 = sshll.u32 [#allocation7], 4
      %s41 = int_to_ptr.vmem [resolvable:$true] %s40
      %46 = dma.hbm_to_vmem [thread:$0]  %s2, 1024, %s41, [#allocation6], 64, 64, 4
    $region13: #{tpu_custom_call.1} parent=1 // pred_fallthru
      _
    // Predicated region
    $region14: #{tpu_custom_call.1} parent=1 // pred_check
      _
    $region15: #{tpu_custom_call.1} parent=1 // pred_check_branch
      %48 = sbr.rel (0) target = $region17
    $region16: #{tpu_custom_call.1} parent=1 // pred_region
      %49 = dma.done [#allocation3], 512
    $region17: #{tpu_custom_call.1} parent=1 // pred_fallthru
      _
    // Predicated region
    $region18: #{tpu_custom_call.1} parent=1 // pred_check
      _
    $region19: #{tpu_custom_call.1} parent=1 // pred_check_branch
      %51 = sbr.rel (0) target = $region21
    $region20: #{tpu_custom_call.1} parent=1 // pred_region
      %52 = dma.done [#allocation6], 512
    $region21: #{tpu_custom_call.1} parent=1 // pred_fallthru
      _
    // Predicated region
    $region22: #{tpu_custom_call.1} parent=1 // pred_check
      _
    $region23: #{tpu_custom_call.1} parent=1 // pred_check_branch
      %54 = sbr.rel (0) target = $region25
    $region24: #{tpu_custom_call.1} parent=1 // pred_region
      %55 = dma.done [#allocation6], 1024
    $region25: #{tpu_custom_call.1} parent=1 // pred_fallthru
      _
    %v57 = vld [vmem:[#allocation2] sm:$0xf]
    %v58 = vld [vmem:[#allocation2 + $0x4] sm:$0xf]
    %v59 = vld [vmem:[#allocation2 + $0x8] sm:$0xf]
    %v60 = vld [vmem:[#allocation2 + $0xc] sm:$0xf]
    %v61 = vld [vmem:[#allocation2 + $0x10] sm:$0xf]
    %v62 = vld [vmem:[#allocation2 + $0x14] sm:$0xf]
    %v63 = vld [vmem:[#allocation2 + $0x18] sm:$0xf]
    %v64 = vld [vmem:[#allocation2 + $0x1c] sm:$0xf]
    %v65 = vld [vmem:[#allocation5] sm:$0xf]
    %v66 = vld [vmem:[#allocation5 + $0x4] sm:$0xf]
    %v67 = vld [vmem:[#allocation5 + $0x8] sm:$0xf]
    %v68 = vld [vmem:[#allocation5 + $0xc] sm:$0xf]
    %v69 = vld [vmem:[#allocation5 + $0x10] sm:$0xf]
    %v70 = vld [vmem:[#allocation5 + $0x14] sm:$0xf]
    %v71 = vld [vmem:[#allocation5 + $0x18] sm:$0xf]
    %v72 = vld [vmem:[#allocation5 + $0x1c] sm:$0xf]
    %v81 = vunpack.c.l.b16 %v57
    %v82 = vunpack.c.l.b16 %v58
    %v83 = vunpack.c.l.b16 %v59
    %v84 = vunpack.c.l.b16 %v60
    %v85 = vunpack.c.l.b16 %v61
    %v86 = vunpack.c.l.b16 %v62
    %v87 = vunpack.c.l.b16 %v63
    %v88 = vunpack.c.l.b16 %v64
    %v89 = vpack.c.b16 %v82, %v81
    %v90 = vpack.c.b16 %v84, %v83
    %v91 = vpack.c.b16 %v86, %v85
    %v92 = vpack.c.b16 %v88, %v87
    %v101 = vunpack.c.l.b16 %v65
    %v102 = vunpack.c.l.b16 %v66
    %v103 = vunpack.c.l.b16 %v67
    %v104 = vunpack.c.l.b16 %v68
    %v105 = vunpack.c.l.b16 %v69
    %v106 = vunpack.c.l.b16 %v70
    %v107 = vunpack.c.l.b16 %v71
    %v108 = vunpack.c.l.b16 %v72
    %v109 = vpack.c.b16 %v102, %v101
    %v110 = vpack.c.b16 %v104, %v103
    %v111 = vpack.c.b16 %v106, %v105
    %v112 = vpack.c.b16 %v108, %v107
    %vm117 = vcmask 523264
    %v119 = vsel %vm117, %v89, 0
    %v122 = vsel %vm117, %v90, 0
    %v125 = vsel %vm117, %v91, 0
    %v128 = vsel %vm117, %v92, 0
    %130 = vmatprep.subr.bf16.mxu0 0
    %131 = vmatpush1.bf16.msra.mxu0 %v109
    %132 = vmatprep.subr.bf16.mxu0 0
    %133 = vmatpush1.bf16.msra.mxu0 %v110
    %134 = vmatprep.subr.bf16.mxu0 0
    %135 = vmatpush1.bf16.msra.mxu0 %v111
    %136 = vmatprep.subr.bf16.mxu0 0
    %137 = vmatpush1.bf16.msra.mxu0 %v112
    %138 = vmatprep.subr.bf16.mxu0 0
    %139 = vmatpush1.bf16.msra.mxu0 0
    %140 = vmatprep.subr.bf16.mxu0 0
    %141 = vmatpush1.bf16.msra.mxu0 0
    %142 = vmatprep.subr.bf16.mxu0 0
    %143 = vmatpush1.bf16.msra.mxu0 0
    %144 = vmatprep.subr.bf16.mxu0 0
    %145 = vmatpush1.bf16.msra.mxu0 0
    %146 = vmatprep.subr.bf16.mxu0 0
    %147 = vmatpush1.bf16.msra.mxu0 0
    %148 = vmatprep.subr.bf16.mxu0 0
    %149 = vmatpush1.bf16.msra.mxu0 0
    %150 = vmatprep.subr.bf16.mxu0 0
    %151 = vmatpush1.bf16.msra.mxu0 0
    %152 = vmatprep.subr.bf16.mxu0 0
    %153 = vmatpush1.bf16.msra.mxu0 0
    %154 = vmatprep.subr.bf16.mxu0 0
    %155 = vmatpush1.bf16.msra.mxu0 0
    %156 = vmatprep.subr.bf16.mxu0 0
    %157 = vmatpush1.bf16.msra.mxu0 0
    %158 = vmatprep.subr.bf16.mxu0 0
    %159 = vmatpush1.bf16.msra.mxu0 0
    %160 = vmatprep.subr.bf16.mxu0 0
    %161 = vmatpush1.bf16.msra.mxu0 0
    %162 = vmatprep.mubr.bf16.mxu0 0
    %163 = vmatmul.mubr.bf16.gmra.mrb[0].mxu0 %v119
    %v164 = vpop.f32.mrb[0].mxu0
    %v165 = vadd.f32 0.0, %v164
    %v166 = vpop.f32.mrb[0].mxu0
    %v167 = vpop.f32.mrb[0].mxu0
    %v168 = vadd.f32 0.0, %v167
    %v169 = vpop.f32.mrb[0].mxu0
    %170 = vmatprep.mubr.bf16.mxu0 0
    %171 = vmatmul.mubr.bf16.gmra.mrb[0].mxu0 %v122
    %v172 = vpop.f32.mrb[0].mxu0
    %v173 = vadd.f32 0.0, %v172
    %v174 = vpop.f32.mrb[0].mxu0
    %v175 = vpop.f32.mrb[0].mxu0
    %v176 = vadd.f32 0.0, %v175
    %v177 = vpop.f32.mrb[0].mxu0
    %178 = vmatprep.mubr.bf16.mxu0 0
    %179 = vmatmul.mubr.bf16.gmra.mrb[0].mxu0 %v125
    %v180 = vpop.f32.mrb[0].mxu0
    %v181 = vadd.f32 0.0, %v180
    %v182 = vpop.f32.mrb[0].mxu0
    %v183 = vpop.f32.mrb[0].mxu0
    %v184 = vadd.f32 0.0, %v183
    %v185 = vpop.f32.mrb[0].mxu0
    %186 = vmatprep.mubr.bf16.mxu0 0
    %187 = vmatmul.mubr.bf16.gmra.mrb[0].mxu0 %v128
    %v188 = vpop.f32.mrb[0].mxu0
    %v189 = vadd.f32 0.0, %v188
    %v190 = vpop.f32.mrb[0].mxu0
    %v191 = vpop.f32.mrb[0].mxu0
    %v192 = vadd.f32 0.0, %v191
    %v193 = vpop.f32.mrb[0].mxu0
    %194 = vdwg.mxu0
    %v195 = vpack.c.bf16 %v168, %v165
    %v196 = vpack.c.bf16 %v176, %v173
    %v197 = vpack.c.bf16 %v184, %v181
    %v198 = vpack.c.bf16 %v192, %v189
    %v199 = vld [vmem:[#allocation7] sm:$0xf]
    %v200 = vld [vmem:[#allocation7 + $0x4] sm:$0xf]
    %v201 = vld [vmem:[#allocation7 + $0x8] sm:$0xf]
    %v202 = vld [vmem:[#allocation7 + $0xc] sm:$0xf]
    %v203 = vld [vmem:[#allocation7 + $0x10] sm:$0xf]
    %v204 = vld [vmem:[#allocation7 + $0x14] sm:$0xf]
    %v205 = vld [vmem:[#allocation7 + $0x18] sm:$0xf]
    %v206 = vld [vmem:[#allocation7 + $0x1c] sm:$0xf]
    %v207 = vld [vmem:[#allocation7 + $0x20] sm:$0xf]
    %v208 = vld [vmem:[#allocation7 + $0x24] sm:$0xf]
    %v209 = vld [vmem:[#allocation7 + $0x28] sm:$0xf]
    %v210 = vld [vmem:[#allocation7 + $0x2c] sm:$0xf]
    %v211 = vld [vmem:[#allocation7 + $0x30] sm:$0xf]
    %v212 = vld [vmem:[#allocation7 + $0x34] sm:$0xf]
    %v213 = vld [vmem:[#allocation7 + $0x38] sm:$0xf]
    %v214 = vld [vmem:[#allocation7 + $0x3c] sm:$0xf]
    %v231 = vunpack.c.l.b16 %v199
    %v232 = vunpack.c.l.b16 %v200
    %v233 = vunpack.c.l.b16 %v201
    %v234 = vunpack.c.l.b16 %v202
    %v235 = vunpack.c.l.b16 %v203
    %v236 = vunpack.c.l.b16 %v204
    %v237 = vunpack.c.l.b16 %v205
    %v238 = vunpack.c.l.b16 %v206
    %v239 = vunpack.c.l.b16 %v207
    %v240 = vunpack.c.l.b16 %v208
    %v241 = vunpack.c.l.b16 %v209
    %v242 = vunpack.c.l.b16 %v210
    %v243 = vunpack.c.l.b16 %v211
    %v244 = vunpack.c.l.b16 %v212
    %v245 = vunpack.c.l.b16 %v213
    %v246 = vunpack.c.l.b16 %v214
    %v247 = vpack.c.b16 %v232, %v231
    %v248 = vpack.c.b16 %v234, %v233
    %v249 = vpack.c.b16 %v236, %v235
    %v250 = vpack.c.b16 %v238, %v237
    %v251 = vpack.c.b16 %v240, %v239
    %v252 = vpack.c.b16 %v242, %v241
    %v253 = vpack.c.b16 %v244, %v243
    %v254 = vpack.c.b16 %v246, %v245
    %263 = vmatprep.subr.bf16.mxu0 0
    %264 = vmatpush1.bf16.msra.mxu0 %v247
    %265 = vmatprep.subr.bf16.mxu0 0
    %266 = vmatpush1.bf16.msra.mxu0 %v248
    %267 = vmatprep.subr.bf16.mxu0 0
    %268 = vmatpush1.bf16.msra.mxu0 %v249
    %269 = vmatprep.subr.bf16.mxu0 0
    %270 = vmatpush1.bf16.msra.mxu0 %v250
    %271 = vmatprep.subr.bf16.mxu0 0
    %272 = vmatpush1.bf16.msra.mxu0 %v251
    %273 = vmatprep.subr.bf16.mxu0 0
    %274 = vmatpush1.bf16.msra.mxu0 %v252
    %275 = vmatprep.subr.bf16.mxu0 0
    %276 = vmatpush1.bf16.msra.mxu0 %v253
    %277 = vmatprep.subr.bf16.mxu0 0
    %278 = vmatpush1.bf16.msra.mxu0 %v254
    %279 = vmatprep.subr.bf16.mxu0 0
    %280 = vmatpush1.bf16.msra.mxu0 0
    %281 = vmatprep.subr.bf16.mxu0 0
    %282 = vmatpush1.bf16.msra.mxu0 0
    %283 = vmatprep.subr.bf16.mxu0 0
    %284 = vmatpush1.bf16.msra.mxu0 0
    %285 = vmatprep.subr.bf16.mxu0 0
    %286 = vmatpush1.bf16.msra.mxu0 0
    %287 = vmatprep.subr.bf16.mxu0 0
    %288 = vmatpush1.bf16.msra.mxu0 0
    %289 = vmatprep.subr.bf16.mxu0 0
    %290 = vmatpush1.bf16.msra.mxu0 0
    %291 = vmatprep.subr.bf16.mxu0 0
    %292 = vmatpush1.bf16.msra.mxu0 0
    %293 = vmatprep.subr.bf16.mxu0 0
    %294 = vmatpush1.bf16.msra.mxu0 0
    %295 = vmatprep.mubr.bf16.mxu0 0
    %296 = vmatmul.mubr.bf16.gmra.mrb[0].mxu0 %v195
    %v297 = vpop.f32.mrb[0].mxu0
    %v298 = vadd.f32 0.0, %v297
    %v299 = vpop.f32.mrb[0].mxu0
    %v300 = vpop.f32.mrb[0].mxu0
    %v301 = vadd.f32 0.0, %v300
    %v302 = vpop.f32.mrb[0].mxu0
    %303 = vmatprep.mubr.bf16.mxu0 0
    %304 = vmatmul.mubr.bf16.gmra.mrb[0].mxu0 %v196
    %v305 = vpop.f32.mrb[0].mxu0
    %v306 = vadd.f32 0.0, %v305
    %v307 = vpop.f32.mrb[0].mxu0
    %v308 = vpop.f32.mrb[0].mxu0
    %v309 = vadd.f32 0.0, %v308
    %v310 = vpop.f32.mrb[0].mxu0
    %311 = vmatprep.mubr.bf16.mxu0 0
    %312 = vmatmul.mubr.bf16.gmra.mrb[0].mxu0 %v197
    %v313 = vpop.f32.mrb[0].mxu0
    %v314 = vadd.f32 0.0, %v313
    %v315 = vpop.f32.mrb[0].mxu0
    %v316 = vpop.f32.mrb[0].mxu0
    %v317 = vadd.f32 0.0, %v316
    %v318 = vpop.f32.mrb[0].mxu0
    %319 = vmatprep.mubr.bf16.mxu0 0
    %320 = vmatmul.mubr.bf16.gmra.mrb[0].mxu0 %v198
    %v321 = vpop.f32.mrb[0].mxu0
    %v322 = vadd.f32 0.0, %v321
    %v323 = vpop.f32.mrb[0].mxu0
    %v324 = vpop.f32.mrb[0].mxu0
    %v325 = vadd.f32 0.0, %v324
    %v326 = vpop.f32.mrb[0].mxu0
    %327 = vdwg.mxu0
    %328 = vst [vmem:[#allocation8] sm:$0xff] %v298
    %329 = vst [vmem:[#allocation8 + $0x8] sm:$0xff] %v301
    %330 = vst [vmem:[#allocation8 + $0x10] sm:$0xff] %v306
    %331 = vst [vmem:[#allocation8 + $0x18] sm:$0xff] %v309
    %332 = vst [vmem:[#allocation8 + $0x20] sm:$0xff] %v314
    %333 = vst [vmem:[#allocation8 + $0x28] sm:$0xff] %v317
    %334 = vst [vmem:[#allocation8 + $0x30] sm:$0xff] %v322
    %335 = vst [vmem:[#allocation8 + $0x38] sm:$0xff] %v325
    // Predicated region
    $region26: #{tpu_custom_call.1} parent=1 // pred_check
      _
    $region27: #{tpu_custom_call.1} parent=1 // pred_check_branch
      %337 = sbr.rel (0) target = $region29
    $region28: #{tpu_custom_call.1} parent=1 // pred_region
      %s339 = ssub.s32 1024, 1024
      %340 = vsyncadd [#allocation4], %s339
      %s341 = sshll.u32 [#allocation8], 4
      %s342 = int_to_ptr.vmem [resolvable:$true] %s341
      %347 = dma.vmem_to_hbm [thread:$0]  %s342, 1024, %s3, [#allocation4], 128, 128, 8
    $region29: #{tpu_custom_call.1} parent=1 // pred_fallthru
      _
    // Predicated region
    $region30: #{tpu_custom_call.1} parent=1 // pred_check
      _
    $region31: #{tpu_custom_call.1} parent=1 // pred_check_branch
      %349 = sbr.rel (0) target = $region33
    $region32: #{tpu_custom_call.1} parent=1 // pred_region
      %350 = dma.done [#allocation4], 1024
    $region33: #{tpu_custom_call.1} parent=1 // pred_fallthru
      _
    %351 = vsyncpa [#allocation3], 1
    %352 = vsyncpa [#allocation6], 1
    %353 = vsyncpa [#allocation4], 1

</llo_original>
